<compile_context>
chip_gen: v6e
topology: v6e:2x2x1
jax: 0.10.0
libtpu: 0.0.40
codegen_flags: <defaults>
</compile_context>

<pallas_src>
import functools

import jax
import jax.numpy as jnp
from jax.experimental import pallas as pl
from jax.experimental.pallas import tpu as pltpu


def _channel_attention_kernel(x_ref, w1t_ref, w2t_ref, o_ref,
                              sum_acc, max_acc, *,
                              hw_total, hw_tile, lane, n_tile, n_hw_blocks):
    """Grid = (batch blocks, hw blocks); hw is the (last, arbitrary) reduction axis.

    x_ref   : (n_tile, C, hw_tile)  input tile (native dtype, upcast per lane-chunk)
    w1t_ref : (C, Ch)   fc1 weight (transposed), f32, VMEM-resident across steps
    w2t_ref : (Ch, C)   fc2 weight (transposed), f32, VMEM-resident across steps
    o_ref   : (n_tile, 1, C)  sigmoid channel gate
    sum_acc : (n_tile, C, lane) f32  lane-partial running sum over HW
    max_acc : (n_tile, C, lane) f32  lane-partial running max over HW
    """
    hw_i = pl.program_id(1)
    last = n_hw_blocks - 1
    n_chunks = hw_tile // lane

    @pl.when(hw_i == 0)
    def _init():
        sum_acc[...] = jnp.zeros_like(sum_acc)
        max_acc[...] = jnp.full_like(max_acc, -jnp.inf)

    def _accumulate(block_base):
        # block_base: Python int HW-offset of this block (only used for the statically
        # known final/tail block), or None for fully-valid blocks.
        s = sum_acc[...]
        m = max_acc[...]
        for j in range(n_chunks):
            if block_base is not None:
                lo = block_base + j * lane
                if lo >= hw_total:
                    break                      # this chunk (and all later ones) is pure padding
                n_valid = min(lane, hw_total - lo)
            else:
                n_valid = lane
            chunk = x_ref[:, :, j * lane:(j + 1) * lane].astype(jnp.float32)
            if n_valid == lane:                # fully valid chunk: pure element-wise VPU work
                s = s + chunk
                m = jnp.maximum(m, chunk)
            else:                              # ragged tail chunk: compile-time lane mask
                col = jax.lax.broadcasted_iota(jnp.int32, (1, 1, lane), 2)
                valid = col < n_valid
                s = s + jnp.where(valid, chunk, 0.0)
                m = jnp.maximum(m, jnp.where(valid, chunk, -jnp.inf))
        sum_acc[...] = s
        max_acc[...] = m

    needs_mask = (hw_total % hw_tile) != 0
    if needs_mask:
        @pl.when(hw_i < last)
        def _():
            _accumulate(None)                  # interior blocks: no mask at all

        @pl.when(hw_i == last)
        def _():
            _accumulate(last * hw_tile)        # tail block: static per-chunk masking
    else:
        _accumulate(None)

    @pl.when(hw_i == last)
    def _finalize():
        # The only cross-lane reduce + relayout, once per batch block.
        avg = jnp.sum(sum_acc[...], axis=-1) * (1.0 / float(hw_total))   # (n_tile, C)
        mx = jnp.max(max_acc[...], axis=-1)                              # (n_tile, C)
        # Fuse both MLP branches into a single fc1/fc2 matmul pair.
        pooled = jnp.concatenate([avg, mx], axis=0)                      # (2*n_tile, C)
        h = jnp.maximum(
            jnp.dot(pooled, w1t_ref[...], preferred_element_type=jnp.float32), 0.0)
        y = jnp.dot(h, w2t_ref[...], preferred_element_type=jnp.float32)  # (2*n_tile, C)
        gate = jax.nn.sigmoid(y[:n_tile] + y[n_tile:])                    # (n_tile, C)
        # NOTE: if N % n_tile != 0, the rows past N of the last batch block hold garbage
        # from the padded input DMA; they stay row-local through the matmuls and the
        # partial output-block write discards them.  Do not rely on their values.
        o_ref[...] = gate[:, None, :].astype(o_ref.dtype)


def _tpu_budget():
    """Returns (per-step target block bytes, vmem_limit cap, #TensorCores) per chip gen."""
    vmem_bytes = 128 << 20
    num_tc = 1
    try:
        info = pltpu.get_tpu_info()
        vmem_bytes = int(getattr(info, "vmem_capacity_bytes", vmem_bytes) or vmem_bytes)
        found = 0
        for attr in ("num_cores", "core_count", "tensorcore_count", "num_tensorcores"):
            v = getattr(info, attr, None)
            if v:
                found = int(v)
                break
        if found <= 0:
            # 64 MiB of per-core VMEM => v7x-class chip (2 TensorCores per chip).
            found = 2 if vmem_bytes <= (64 << 20) else 1
        num_tc = max(1, min(2, found))
    except Exception:
        pass
    if vmem_bytes <= (64 << 20):   # v7x class: fast HBM (~3.2 TB/s), 64 MiB VMEM
        target = 4 << 20
        vmem_cap = 56 << 20
    else:                          # v5e / v6e: 128 MiB VMEM, slower HBM -> bigger blocks
        target = 8 << 20
        vmem_cap = 100 << 20
    return target, vmem_cap, num_tc


def channel_attention(x, w1, w2, *, n_tile=None, hw_tile=None):
    """x : (N, C, H, W)        NCHW input (any float dtype)
       w1: (C//16, C, 1, 1)    fc1 weights (Conv2d 1x1, bias=False)
       w2: (C, C//16, 1, 1)    fc2 weights (Conv2d 1x1, bias=False)
       returns (N, C, 1, 1), dtype of x."""
    N, C, H, W = x.shape
    Ch = w1.shape[0]
    HW = H * W
    itemsize = jnp.dtype(x.dtype).itemsize

    # Native-dtype DMA of x (upcast happens in-kernel); tiny f32 weights.
    x_flat = x.reshape(N, C, HW)
    w1t = w1.reshape(Ch, C).T.astype(jnp.float32)   # (C, Ch)
    w2t = w2.reshape(C, Ch).T.astype(jnp.float32)   # (Ch, C)

    target, vmem_cap, num_tc = _tpu_budget()

    # ---- HW (lane) tile: full extent when HW <= 128, else a multiple of 128 ----
    if hw_tile is None:
        if HW <= 128:
            hw_tile = HW
        else:
            cols_fit = max(1, target // (C * 128 * itemsize))
            hw_tile = min((HW // 128) * 128, cols_fit * 128)
    # snap (user or heuristic) value to a legal & chunk-friendly size
    if HW <= 128:
        hw_tile = HW
    else:
        hw_tile = min(int(hw_tile), (HW // 128) * 128)
        hw_tile = max(128, (hw_tile // 128) * 128)
    lane = hw_tile if hw_tile < 128 else 128

    # ---- batch tile (leading dim of every block -> no multiple-of-8 constraint) ----
    if n_tile is None:
        # keep >= num_tc batch blocks when possible so the "parallel" axis actually
        # shards across both TensorCores on v7x
        n_cap = pl.cdiv(N, num_tc) if (num_tc >= 2 and N >= 2) else N
        per_img = C * hw_tile * itemsize
        n_tile = max(1, min(n_cap, target // max(1, per_img), N))
        # cap the lane-partial accumulator scratch (2 * n_tile * C * lane * 4 bytes)
        acc_cap = vmem_cap // 6
        n_tile = max(1, min(n_tile, acc_cap // max(1, 2 * C * lane * 4)))
    n_tile = max(1, min(int(n_tile), N))

    def _vmem_needed(nt, ht):
        block = nt * C * ht * itemsize          # one input buffer
        acc = 2 * nt * C * lane * 4             # sum + max scratch
        chunk = nt * C * lane * 4               # live f32 chunk intermediates
        weights = 2 * 2 * C * Ch * 4
        outb = 2 * nt * C * max(itemsize, 4)
        return 2 * block + acc + 4 * chunk + weights + outb + (2 << 20)

    # Shrink tiles if the working set would exceed the per-generation VMEM budget.
    while _vmem_needed(n_tile, hw_tile) > vmem_cap and hw_tile > 128:
        hw_tile = max(128, ((hw_tile // 2) // 128) * 128)
    while _vmem_needed(n_tile, hw_tile) > vmem_cap and n_tile > 1:
        n_tile = max(1, n_tile // 2)

    grid = (pl.cdiv(N, n_tile), pl.cdiv(HW, hw_tile))
    n_hw_blocks = grid[1]
    vmem_limit = int(min(vmem_cap, max(32 << 20, _vmem_needed(n_tile, hw_tile))))

    kernel = functools.partial(
        _channel_attention_kernel,
        hw_total=HW, hw_tile=hw_tile, lane=lane,
        n_tile=n_tile, n_hw_blocks=n_hw_blocks)

    out = pl.pallas_call(
        kernel,
        out_shape=jax.ShapeDtypeStruct((N, 1, C), x.dtype),
        grid_spec=pltpu.PrefetchScalarGridSpec(
            num_scalar_prefetch=0,
            grid=grid,
            in_specs=[
                pl.BlockSpec((n_tile, C, hw_tile), lambda n, h: (n, 0, h)),
                # Constant index maps: weights stay VMEM-resident across all steps.
                pl.BlockSpec((C, Ch), lambda n, h: (0, 0)),
                pl.BlockSpec((Ch, C), lambda n, h: (0, 0)),
            ],
            out_specs=pl.BlockSpec((n_tile, 1, C), lambda n, h: (n, 0, 0)),
            scratch_shapes=[
                pltpu.VMEM((n_tile, C, lane), jnp.float32),   # lane-partial running sum
                pltpu.VMEM((n_tile, C, lane), jnp.float32),   # lane-partial running max
            ],
        ),
        compiler_params=pltpu.CompilerParams(
            dimension_semantics=("parallel", "arbitrary"),
            vmem_limit_bytes=vmem_limit,
        ),
    )(x_flat, w1t, w2t)

    return out.reshape(N, C, 1, 1)


def channel_attention_ref(x, w1, w2):
    # Pure-JAX reference mirroring the PyTorch forward.
    N, C, H, W = x.shape
    Ch = w1.shape[0]
    xf = x.astype(jnp.float32)
    avg = jnp.mean(xf, axis=(2, 3))                 # (N, C)
    mx = jnp.max(xf, axis=(2, 3))                   # (N, C)
    w1m = w1.reshape(Ch, C).astype(jnp.float32)
    w2m = w2.reshape(C, Ch).astype(jnp.float32)

    def mlp(v):
        return jnp.maximum(v @ w1m.T, 0.0) @ w2m.T

    out = jax.nn.sigmoid(mlp(avg) + mlp(mx))
    return out.reshape(N, C, 1, 1).astype(x.dtype)


if __name__ == "__main__":
    key = jax.random.PRNGKey(0)
    kx, k1, k2, kx2 = jax.random.split(key, 4)

    # --- test 1: typical small use (in_planes=32 -> hidden = 32 // 16 = 2) ---
    N, C, H, W = 2, 32, 16, 16
    Ch = C // 16
    x = jax.random.normal(kx, (N, C, H, W), dtype=jnp.float32)
    w1 = jax.random.normal(k1, (Ch, C, 1, 1), dtype=jnp.float32) * 0.1
    w2 = jax.random.normal(k2, (C, Ch, 1, 1), dtype=jnp.float32) * 0.1

    out = jax.block_until_ready(channel_attention(x, w1, w2))
    ref = channel_attention_ref(x, w1, w2)
    assert out.shape == (N, C, 1, 1)
    assert jnp.allclose(out, ref, atol=1e-5, rtol=1e-5)

    # --- test 2: multiple HW blocks + masked tail + partial batch block (N=3, n_tile=2) ---
    N2, H2, W2 = 3, 18, 18                 # HW = 324 -> 3 blocks of 128 with masked remainder
    x2 = jax.random.normal(kx2, (N2, C, H2, W2), dtype=jnp.float32)
    out2 = jax.block_until_ready(channel_attention(x2, w1, w2, n_tile=2, hw_tile=128))
    ref2 = channel_attention_ref(x2, w1, w2)
    assert out2.shape == (N2, C, 1, 1)
    assert jnp.allclose(out2, ref2, atol=1e-5, rtol=1e-5)

    # --- test 3: same shape through the default generation-aware heuristics ---
    out3 = jax.block_until_ready(channel_attention(x2, w1, w2))
    assert jnp.allclose(out3, ref2, atol=1e-5, rtol=1e-5)

    print("KERNEL_OK")
</pallas_src>

<mosaic_0001>
module attributes {stable_mosaic.version = 11 : i64} {
  func.func @_channel_attention_kernel(%arg0: i32, %arg1: i32, %arg2: memref<2x32x256xf32, #tpu.memory_space<vmem>>, %arg3: memref<32x2xf32, #tpu.memory_space<vmem>>, %arg4: memref<2x32xf32, #tpu.memory_space<vmem>>, %arg5: memref<2x1x32xf32, #tpu.memory_space<vmem>>, %arg6: memref<2x32x128xf32, #tpu.memory_space<vmem>>, %arg7: memref<2x32x128xf32, #tpu.memory_space<vmem>>) attributes {dimension_semantics = [#tpu.dimension_semantics<parallel>, #tpu.dimension_semantics<arbitrary>], iteration_bounds = array<i64: 1, 1>, scalar_prefetch = 0 : i64, scratch_operands = 2 : i64, tpu.core_type = #tpu.core_type<tc>, window_params = [{transform_indices = @transform_0, window_bounds = array<i64: 2, 32, 256>}, {pipeline_mode = #tpu.pipeline_mode<synchronous>, transform_indices = @transform_1, window_bounds = array<i64: 32, 2>}, {pipeline_mode = #tpu.pipeline_mode<synchronous>, transform_indices = @transform_2, window_bounds = array<i64: 2, 32>}, {transform_indices = @transform_3, window_bounds = array<i64: 2, 1, 32>}]} {
    %c0_i32 = arith.constant 0 : i32
    %0 = arith.cmpi eq, %arg1, %c0_i32 : i32
    %1 = arith.extui %0 : i1 to i32
    %c0_i32_0 = arith.constant 0 : i32
    %2 = arith.cmpi ne, %1, %c0_i32_0 : i32
    scf.if %2 {
      %cst = arith.constant 0.000000e+00 : f32
      %16 = vector.broadcast %cst : f32 to vector<2x32x128xf32>
      %c0_19 = arith.constant 0 : index
      %c0_20 = arith.constant 0 : index
      %c0_21 = arith.constant 0 : index
      %17 = vector.load %arg6[%c0_19, %c0_20, %c0_21] : memref<2x32x128xf32, #tpu.memory_space<vmem>>, vector<2x32x128xf32>
      tpu.vector_store %arg6[%c0_19, %c0_20, %c0_21], %16 {strides = array<i32>} : memref<2x32x128xf32, #tpu.memory_space<vmem>>, vector<2x32x128xf32>,
      %cst_22 = arith.constant 0xFF800000 : f32
      %18 = vector.broadcast %cst_22 : f32 to vector<2x32x128xf32>
      %c0_23 = arith.constant 0 : index
      %c0_24 = arith.constant 0 : index
      %c0_25 = arith.constant 0 : index
      %19 = vector.load %arg7[%c0_23, %c0_24, %c0_25] : memref<2x32x128xf32, #tpu.memory_space<vmem>>, vector<2x32x128xf32>
      tpu.vector_store %arg7[%c0_23, %c0_24, %c0_25], %18 {strides = array<i32>} : memref<2x32x128xf32, #tpu.memory_space<vmem>>, vector<2x32x128xf32>,
    } else {
    }
    %c0 = arith.constant 0 : index
    %c0_1 = arith.constant 0 : index
    %c0_2 = arith.constant 0 : index
    %3 = vector.load %arg6[%c0, %c0_1, %c0_2] : memref<2x32x128xf32, #tpu.memory_space<vmem>>, vector<2x32x128xf32>
    %c0_3 = arith.constant 0 : index
    %c0_4 = arith.constant 0 : index
    %c0_5 = arith.constant 0 : index
    %4 = vector.load %arg7[%c0_3, %c0_4, %c0_5] : memref<2x32x128xf32, #tpu.memory_space<vmem>>, vector<2x32x128xf32>
    %c0_6 = arith.constant 0 : index
    %c0_7 = arith.constant 0 : index
    %c0_8 = arith.constant 0 : index
    %5 = vector.load %arg2[%c0_6, %c0_7, %c0_8] : memref<2x32x256xf32, #tpu.memory_space<vmem>>, vector<2x32x128xf32>
    %6 = arith.addf %3, %5 : vector<2x32x128xf32>
    %7 = arith.maximumf %4, %5 : vector<2x32x128xf32>
    %c0_9 = arith.constant 0 : index
    %c0_10 = arith.constant 0 : index
    %c128 = arith.constant 128 : index
    %8 = vector.load %arg2[%c0_9, %c0_10, %c128] : memref<2x32x256xf32, #tpu.memory_space<vmem>>, vector<2x32x128xf32>
    %9 = arith.addf %6, %8 : vector<2x32x128xf32>
    %10 = arith.maximumf %7, %8 : vector<2x32x128xf32>
    %c0_11 = arith.constant 0 : index
    %c0_12 = arith.constant 0 : index
    %c0_13 = arith.constant 0 : index
    %11 = vector.load %arg6[%c0_11, %c0_12, %c0_13] : memref<2x32x128xf32, #tpu.memory_space<vmem>>, vector<2x32x128xf32>
    tpu.vector_store %arg6[%c0_11, %c0_12, %c0_13], %9 {strides = array<i32>} : memref<2x32x128xf32, #tpu.memory_space<vmem>>, vector<2x32x128xf32>,
    %c0_14 = arith.constant 0 : index
    %c0_15 = arith.constant 0 : index
    %c0_16 = arith.constant 0 : index
    %12 = vector.load %arg7[%c0_14, %c0_15, %c0_16] : memref<2x32x128xf32, #tpu.memory_space<vmem>>, vector<2x32x128xf32>
    tpu.vector_store %arg7[%c0_14, %c0_15, %c0_16], %10 {strides = array<i32>} : memref<2x32x128xf32, #tpu.memory_space<vmem>>, vector<2x32x128xf32>,
    %c0_i32_17 = arith.constant 0 : i32
    %13 = arith.cmpi eq, %arg1, %c0_i32_17 : i32
    %14 = arith.extui %13 : i1 to i32
    %c0_i32_18 = arith.constant 0 : i32
    %15 = arith.cmpi ne, %14, %c0_i32_18 : i32
    scf.if %15 {
      %c0_19 = arith.constant 0 : index
      %c0_20 = arith.constant 0 : index
      %c0_21 = arith.constant 0 : index
      %16 = vector.load %arg6[%c0_19, %c0_20, %c0_21] : memref<2x32x128xf32, #tpu.memory_space<vmem>>, vector<2x32x128xf32>
      %cst = arith.constant dense<0.000000e+00> : vector<2x32xf32>
      %17 = vector.multi_reduction <add>, %16, %cst [2] : vector<2x32x128xf32> to vector<2x32xf32>
      %cst_22 = arith.constant 3.906250e-03 : f32
      %18 = vector.broadcast %cst_22 : f32 to vector<2x32xf32>
      %19 = arith.mulf %17, %18 : vector<2x32xf32>
      %c0_23 = arith.constant 0 : index
      %c0_24 = arith.constant 0 : index
      %c0_25 = arith.constant 0 : index
      %20 = vector.load %arg7[%c0_23, %c0_24, %c0_25] : memref<2x32x128xf32, #tpu.memory_space<vmem>>, vector<2x32x128xf32>
      %cst_26 = arith.constant dense<0xFF800000> : vector<2x32xf32>
      %21 = vector.multi_reduction <maximumf>, %20, %cst_26 [2] : vector<2x32x128xf32> to vector<2x32xf32>
      %22 = tpu.concatenate %19, %21 in 0 : vector<2x32xf32>, vector<2x32xf32> -> vector<4x32xf32>
      %c0_27 = arith.constant 0 : index
      %c0_28 = arith.constant 0 : index
      %23 = vector.load %arg3[%c0_27, %c0_28] : memref<32x2xf32, #tpu.memory_space<vmem>>, vector<32x2xf32>
      %cst_29 = arith.constant dense<0.000000e+00> : vector<4x2xf32>
      %24 = tpu.matmul %22, %23, %cst_29 {dimension_numbers = #tpu.dot_dimension_numbers<[1], [0], [0], [1], [0, 0, 1, 1], [], []>} : vector<4x32xf32>, vector<32x2xf32>, vector<4x2xf32> -> vector<4x2xf32>
      %cst_30 = arith.constant 0.000000e+00 : f32
      %25 = vector.broadcast %cst_30 : f32 to vector<4x2xf32>
      %26 = arith.maximumf %24, %25 : vector<4x2xf32>
      %c0_31 = arith.constant 0 : index
      %c0_32 = arith.constant 0 : index
      %27 = vector.load %arg4[%c0_31, %c0_32] : memref<2x32xf32, #tpu.memory_space<vmem>>, vector<2x32xf32>
      %cst_33 = arith.constant dense<0.000000e+00> : vector<4x32xf32>
      %28 = tpu.matmul %26, %27, %cst_33 {dimension_numbers = #tpu.dot_dimension_numbers<[1], [0], [0], [1], [0, 0, 1, 1], [], []>} : vector<4x2xf32>, vector<2x32xf32>, vector<4x32xf32> -> vector<4x32xf32>
      %29 = vector.extract_strided_slice %28 {offsets = [0, 0], sizes = [2, 32], strides = [1, 1]} : vector<4x32xf32> to vector<2x32xf32>
      %30 = vector.extract_strided_slice %28 {offsets = [2, 0], sizes = [2, 32], strides = [1, 1]} : vector<4x32xf32> to vector<2x32xf32>
      %31 = arith.addf %29, %30 : vector<2x32xf32>
      %32 = arith.negf %31 : vector<2x32xf32>
      %33 = math.exp %32 : vector<2x32xf32>
      %cst_34 = arith.constant 1.000000e+00 : f32
      %34 = vector.broadcast %cst_34 : f32 to vector<2x32xf32>
      %35 = arith.addf %34, %33 : vector<2x32xf32>
      %36 = arith.divf %34, %35 : vector<2x32xf32>
      %37 = vector.shape_cast %36 : vector<2x32xf32> to vector<2x1x32xf32>
      %c0_35 = arith.constant 0 : index
      %c0_36 = arith.constant 0 : index
      %c0_37 = arith.constant 0 : index
      %38 = vector.load %arg5[%c0_35, %c0_36, %c0_37] : memref<2x1x32xf32, #tpu.memory_space<vmem>>, vector<2x1x32xf32>
      tpu.vector_store %arg5[%c0_35, %c0_36, %c0_37], %37 {strides = array<i32>} : memref<2x1x32xf32, #tpu.memory_space<vmem>>, vector<2x1x32xf32>,
    } else {
    }
    return
  }
  func.func @transform_0(%arg0: i32, %arg1: i32) -> (i32, i32, i32) {
    %c0_i32 = arith.constant 0 : i32
    %c0_i32_0 = arith.constant 0 : i32
    return %arg0, %c0_i32, %arg1 : i32, i32, i32
  }
  func.func @transform_1(%arg0: i32, %arg1: i32) -> (i32, i32) {
    %c0_i32 = arith.constant 0 : i32
    %c0_i32_0 = arith.constant 0 : i32
    %c0_i32_1 = arith.constant 0 : i32
    return %c0_i32, %c0_i32_0 : i32, i32
  }
  func.func @transform_2(%arg0: i32, %arg1: i32) -> (i32, i32) {
    %c0_i32 = arith.constant 0 : i32
    %c0_i32_0 = arith.constant 0 : i32
    %c0_i32_1 = arith.constant 0 : i32
    return %c0_i32, %c0_i32_0 : i32, i32
  }
  func.func @transform_3(%arg0: i32, %arg1: i32) -> (i32, i32, i32) {
    %c0_i32 = arith.constant 0 : i32
    %c0_i32_0 = arith.constant 0 : i32
    %c0_i32_1 = arith.constant 0 : i32
    return %arg0, %c0_i32, %c0_i32_0 : i32, i32, i32
  }
}

</mosaic_0001>

<llo_original>
// kernel: tpu_custom_call.1
$region0: #{tpu_custom_call.1}
  #allocation0 [shape = 'u32[]', space=smem, size = 0x4, offset = 0x4, fixed_abs, tag = 'smem constant byte address 0x4 - core index']
  #allocation1 [shape = 'u32[144,128]{1,0:T(1,128)}', space=vmem, size = 0x12000, scoped, tag = 'internal scratch']
  #allocation2 [shape = 'f32[2,32,128]{2,1,0:T(8,128)}', space=vmem, size = 0x8000, scoped, tag = 'scratch operand']
  #allocation3 [shape = 'f32[2,32,128]{2,1,0:T(8,128)}', space=vmem, size = 0x8000, scoped, tag = 'scratch operand']
  %s0 = inlined_call_operand.hbm [shape: f32[2,32,256], index: 0, kind: input, shape index: {}]
  %s1 = inlined_call_operand.vmem [shape: f32[32,2], index: 1, kind: input, shape index: {}]
  %s2 = inlined_call_operand.vmem [shape: f32[2,32], index: 2, kind: input, shape index: {}]
  %s3 = inlined_call_operand.hbm [shape: f32[2,1,32], index: 3, kind: output, shape index: {}]
  %s4 = sld [smem:[#allocation0]]
  $region34: #{tpu_custom_call.1} parent=0
    _
  %s6 = ssub.s32 1, %s4
  %s7 = scalar_select 0, %s6, %s4
  $region1: #{tpu_custom_call.1} parent=0
    #allocation4 [shape = 'u8[65536]{0}', space=vmem, size = 0x10000, scoped, tag = 'input window, operand 0, single buffered']
    #allocation5 [shape = 's32[1]{0}', space=sflag, size = 0x4, scoped, tag = 'scoped memory for tpu_custom_call.1']
    #allocation6 [shape = 's32[1]{0}', space=sflag, size = 0x4, scoped, tag = 'scoped memory for tpu_custom_call.1']
    #allocation7 [shape = 'u8[1024]{0}', space=vmem, size = 0x400, scoped, tag = 'output window, operand 0, single buffered']
    %8 = vsyncpa [#allocation5], 0
    %9 = vsyncpa [#allocation6], 0
    // Predicated region
    $region2: #{tpu_custom_call.1} parent=1 // pred_check
      _
    $region3: #{tpu_custom_call.1} parent=1 // pred_check_branch
      %11 = sbr.rel (0) target = $region5
    $region4: #{tpu_custom_call.1} parent=1 // pred_region
      %s13 = ssub.s32 2048, 2048
      %14 = vsyncadd [#allocation5], %s13
      %s15 = sshll.u32 [#allocation4], 4
      %s16 = int_to_ptr.vmem [resolvable:$true] %s15
      %21 = dma.hbm_to_vmem [thread:$0]  %s0, 2048, %s16, [#allocation5], 256, 256, 16
    $region5: #{tpu_custom_call.1} parent=1 // pred_fallthru
      _
    // Predicated region
    $region6: #{tpu_custom_call.1} parent=1 // pred_check
      _
    $region7: #{tpu_custom_call.1} parent=1 // pred_check_branch
      %23 = sbr.rel (0) target = $region9
    $region8: #{tpu_custom_call.1} parent=1 // pred_region
      _
    $region9: #{tpu_custom_call.1} parent=1 // pred_fallthru
      _
    // Predicated region
    $region10: #{tpu_custom_call.1} parent=1 // pred_check
      _
    $region11: #{tpu_custom_call.1} parent=1 // pred_check_branch
      %25 = sbr.rel (0) target = $region13
    $region12: #{tpu_custom_call.1} parent=1 // pred_region
      _
    $region13: #{tpu_custom_call.1} parent=1 // pred_fallthru
      _
    // Predicated region
    $region14: #{tpu_custom_call.1} parent=1 // pred_check
      _
    $region15: #{tpu_custom_call.1} parent=1 // pred_check_branch
      %27 = sbr.rel (0) target = $region17
    $region16: #{tpu_custom_call.1} parent=1 // pred_region
      %28 = dma.done [#allocation5], 2048
    $region17: #{tpu_custom_call.1} parent=1 // pred_fallthru
      _
    %p29 = scmp.eq.s32.totalorder 0, 0
    // Predicated region
    $region18: #{tpu_custom_call.1} parent=1 // pred_check
      %p30 = pneg %p29
    $region19: #{tpu_custom_call.1} parent=1 // pred_check_branch
      %32 = sbr.rel (%p30) target = $region21
    $region20: #{tpu_custom_call.1} parent=1 // pred_region
      %33 = vst [vmem:[#allocation2] sm:$0xff] 0.0
      %34 = vst [vmem:[#allocation2 + $0x8] sm:$0xff] 0.0
      %35 = vst [vmem:[#allocation2 + $0x10] sm:$0xff] 0.0
      %36 = vst [vmem:[#allocation2 + $0x18] sm:$0xff] 0.0
      %37 = vst [vmem:[#allocation2 + $0x20] sm:$0xff] 0.0
      %38 = vst [vmem:[#allocation2 + $0x28] sm:$0xff] 0.0
      %39 = vst [vmem:[#allocation2 + $0x30] sm:$0xff] 0.0
      %40 = vst [vmem:[#allocation2 + $0x38] sm:$0xff] 0.0
      %41 = vst [vmem:[#allocation3] sm:$0xff] -inf
      %42 = vst [vmem:[#allocation3 + $0x8] sm:$0xff] -inf
      %43 = vst [vmem:[#allocation3 + $0x10] sm:$0xff] -inf
      %44 = vst [vmem:[#allocation3 + $0x18] sm:$0xff] -inf
      %45 = vst [vmem:[#allocation3 + $0x20] sm:$0xff] -inf
      %46 = vst [vmem:[#allocation3 + $0x28] sm:$0xff] -inf
      %47 = vst [vmem:[#allocation3 + $0x30] sm:$0xff] -inf
      %48 = vst [vmem:[#allocation3 + $0x38] sm:$0xff] -inf
    $region21: #{tpu_custom_call.1} parent=1 // pred_fallthru
      _
    %v49 = vld [vmem:[#allocation2] sm:$0xff]
    %v50 = vld [vmem:[#allocation2 + $0x8] sm:$0xff]
    %v51 = vld [vmem:[#allocation2 + $0x10] sm:$0xff]
    %v52 = vld [vmem:[#allocation2 + $0x18] sm:$0xff]
    %v53 = vld [vmem:[#allocation2 + $0x20] sm:$0xff]
    %v54 = vld [vmem:[#allocation2 + $0x28] sm:$0xff]
    %v55 = vld [vmem:[#allocation2 + $0x30] sm:$0xff]
    %v56 = vld [vmem:[#allocation2 + $0x38] sm:$0xff]
    %v57 = vld [vmem:[#allocation3] sm:$0xff]
    %v58 = vld [vmem:[#allocation3 + $0x8] sm:$0xff]
    %v59 = vld [vmem:[#allocation3 + $0x10] sm:$0xff]
    %v60 = vld [vmem:[#allocation3 + $0x18] sm:$0xff]
    %v61 = vld [vmem:[#allocation3 + $0x20] sm:$0xff]
    %v62 = vld [vmem:[#allocation3 + $0x28] sm:$0xff]
    %v63 = vld [vmem:[#allocation3 + $0x30] sm:$0xff]
    %v64 = vld [vmem:[#allocation3 + $0x38] sm:$0xff]
    %v65 = vld [vmem:[#allocation4] sm:$0xff]
    %v66 = vld [vmem:[#allocation4 + $0x10] sm:$0xff]
    %v67 = vld [vmem:[#allocation4 + $0x20] sm:$0xff]
    %v68 = vld [vmem:[#allocation4 + $0x30] sm:$0xff]
    %v69 = vld [vmem:[#allocation4 + $0x40] sm:$0xff]
    %v70 = vld [vmem:[#allocation4 + $0x50] sm:$0xff]
    %v71 = vld [vmem:[#allocation4 + $0x60] sm:$0xff]
    %v72 = vld [vmem:[#allocation4 + $0x70] sm:$0xff]
    %v73 = vadd.f32 %v49, %v65
    %v74 = vadd.f32 %v50, %v66
    %v75 = vadd.f32 %v51, %v67
    %v76 = vadd.f32 %v52, %v68
    %v77 = vadd.f32 %v53, %v69
    %v78 = vadd.f32 %v54, %v70
    %v79 = vadd.f32 %v55, %v71
    %v80 = vadd.f32 %v56, %v72
    %v81 = vmax.f32 %v57, %v65
    %v82 = vmax.f32 %v58, %v66
    %v83 = vmax.f32 %v59, %v67
    %v84 = vmax.f32 %v60, %v68
    %v85 = vmax.f32 %v61, %v69
    %v86 = vmax.f32 %v62, %v70
    %v87 = vmax.f32 %v63, %v71
    %v88 = vmax.f32 %v64, %v72
    %v89 = vld [vmem:[#allocation4 + $0x8] sm:$0xff]
    %v90 = vld [vmem:[#allocation4 + $0x18] sm:$0xff]
    %v91 = vld [vmem:[#allocation4 + $0x28] sm:$0xff]
    %v92 = vld [vmem:[#allocation4 + $0x38] sm:$0xff]
    %v93 = vld [vmem:[#allocation4 + $0x48] sm:$0xff]
    %v94 = vld [vmem:[#allocation4 + $0x58] sm:$0xff]
    %v95 = vld [vmem:[#allocation4 + $0x68] sm:$0xff]
    %v96 = vld [vmem:[#allocation4 + $0x78] sm:$0xff]
    %v97 = vadd.f32 %v73, %v89
    %v98 = vadd.f32 %v74, %v90
    %v99 = vadd.f32 %v75, %v91
    %v100 = vadd.f32 %v76, %v92
    %v101 = vadd.f32 %v77, %v93
    %v102 = vadd.f32 %v78, %v94
    %v103 = vadd.f32 %v79, %v95
    %v104 = vadd.f32 %v80, %v96
    %v105 = vmax.f32 %v81, %v89
    %v106 = vmax.f32 %v82, %v90
    %v107 = vmax.f32 %v83, %v91
    %v108 = vmax.f32 %v84, %v92
    %v109 = vmax.f32 %v85, %v93
    %v110 = vmax.f32 %v86, %v94
    %v111 = vmax.f32 %v87, %v95
    %v112 = vmax.f32 %v88, %v96
    %113 = vst [vmem:[#allocation2] sm:$0xff] %v97
    %114 = vst [vmem:[#allocation2 + $0x8] sm:$0xff] %v98
    %115 = vst [vmem:[#allocation2 + $0x10] sm:$0xff] %v99
    %116 = vst [vmem:[#allocation2 + $0x18] sm:$0xff] %v100
    %117 = vst [vmem:[#allocation2 + $0x20] sm:$0xff] %v101
    %118 = vst [vmem:[#allocation2 + $0x28] sm:$0xff] %v102
    %119 = vst [vmem:[#allocation2 + $0x30] sm:$0xff] %v103
    %120 = vst [vmem:[#allocation2 + $0x38] sm:$0xff] %v104
    %121 = vst [vmem:[#allocation3] sm:$0xff] %v105
    %122 = vst [vmem:[#allocation3 + $0x8] sm:$0xff] %v106
    %123 = vst [vmem:[#allocation3 + $0x10] sm:$0xff] %v107
    %124 = vst [vmem:[#allocation3 + $0x18] sm:$0xff] %v108
    %125 = vst [vmem:[#allocation3 + $0x20] sm:$0xff] %v109
    %126 = vst [vmem:[#allocation3 + $0x28] sm:$0xff] %v110
    %127 = vst [vmem:[#allocation3 + $0x30] sm:$0xff] %v111
    %128 = vst [vmem:[#allocation3 + $0x38] sm:$0xff] %v112
    // Predicated region
    $region22: #{tpu_custom_call.1} parent=1 // pred_check
      %p129 = pneg %p29
    $region23: #{tpu_custom_call.1} parent=1 // pred_check_branch
      %131 = sbr.rel (%p129) target = $region25
    $region24: #{tpu_custom_call.1} parent=1 // pred_region
      %v132 = vld [vmem:[#allocation2] sm:$0xff]
      %v133 = vld [vmem:[#allocation2 + $0x8] sm:$0xff]
      %v134 = vld [vmem:[#allocation2 + $0x10] sm:$0xff]
      %v135 = vld [vmem:[#allocation2 + $0x18] sm:$0xff]
      %v136 = vld [vmem:[#allocation2 + $0x20] sm:$0xff]
      %v137 = vld [vmem:[#allocation2 + $0x28] sm:$0xff]
      %v138 = vld [vmem:[#allocation2 + $0x30] sm:$0xff]
      %v139 = vld [vmem:[#allocation2 + $0x38] sm:$0xff]
      %140 = vadd.xlane.f32.xlu0 %v132
      %v141 = vpop.xlane.xlu0 %140
      %142 = vadd.xlane.f32.xlu0 %v133
      %v143 = vpop.xlane.xlu0 %142
      %144 = vadd.xlane.f32.xlu0 %v134
      %v145 = vpop.xlane.xlu0 %144
      %146 = vadd.xlane.f32.xlu0 %v135
      %v147 = vpop.xlane.xlu0 %146
      %148 = vadd.xlane.f32.xlu0 %v136
      %v149 = vpop.xlane.xlu0 %148
      %150 = vadd.xlane.f32.xlu0 %v137
      %v151 = vpop.xlane.xlu0 %150
      %152 = vadd.xlane.f32.xlu0 %v138
      %v153 = vpop.xlane.xlu0 %152
      %154 = vadd.xlane.f32.xlu0 %v139
      %v155 = vpop.xlane.xlu0 %154
      %v156 = vmul.f32 %v141, 0.00390625
      %v157 = vmul.f32 %v143, 0.00390625
      %v158 = vmul.f32 %v145, 0.00390625
      %v159 = vmul.f32 %v147, 0.00390625
      %v160 = vmul.f32 %v149, 0.00390625
      %v161 = vmul.f32 %v151, 0.00390625
      %v162 = vmul.f32 %v153, 0.00390625
      %v163 = vmul.f32 %v155, 0.00390625
      %v164 = vld [vmem:[#allocation3] sm:$0xff]
      %v165 = vld [vmem:[#allocation3 + $0x8] sm:$0xff]
      %v166 = vld [vmem:[#allocation3 + $0x10] sm:$0xff]
      %v167 = vld [vmem:[#allocation3 + $0x18] sm:$0xff]
      %v168 = vld [vmem:[#allocation3 + $0x20] sm:$0xff]
      %v169 = vld [vmem:[#allocation3 + $0x28] sm:$0xff]
      %v170 = vld [vmem:[#allocation3 + $0x30] sm:$0xff]
      %v171 = vld [vmem:[#allocation3 + $0x38] sm:$0xff]
      %172 = vmax.xlane.f32.xlu0 %v164
      %v173 = vpop.xlane.xlu0 %172
      %174 = vmax.xlane.f32.xlu0 %v165
      %v175 = vpop.xlane.xlu0 %174
      %176 = vmax.xlane.f32.xlu0 %v166
      %v177 = vpop.xlane.xlu0 %176
      %178 = vmax.xlane.f32.xlu0 %v167
      %v179 = vpop.xlane.xlu0 %178
      %180 = vmax.xlane.f32.xlu0 %v168
      %v181 = vpop.xlane.xlu0 %180
      %182 = vmax.xlane.f32.xlu0 %v169
      %v183 = vpop.xlane.xlu0 %182
      %184 = vmax.xlane.f32.xlu0 %v170
      %v185 = vpop.xlane.xlu0 %184
      %186 = vmax.xlane.f32.xlu0 %v171
      %v187 = vpop.xlane.xlu0 %186
      %v196 = vlaneseq
      %v197 = vand.u32 %v196, 127
      %v198 = vlaneseq
      %v199 = vshrl.u32 %v198, 7
      %v200 = vsub.s32 %v197, %v199
      %v201 = vrot.slane %v156, %v200
      %v202 = vadd.s32 %v197, 4294967288
      %v203 = vlaneseq
      %v204 = vshrl.u32 %v203, 7
      %v205 = vsub.s32 %v202, %v204
      %v206 = vrot.slane %v157, %v205
      %vm207 = vcmask 130112
      %v208 = vsel %vm207, %v206, %v201
      %v209 = vadd.s32 %v197, 4294967280
      %v210 = vlaneseq
      %v211 = vshrl.u32 %v210, 7
      %v212 = vsub.s32 %v209, %v211
      %v213 = vrot.slane %v158, %v212
      %vm214 = vcmask 195712
      %v215 = vsel %vm214, %v213, %v208
      %v216 = vadd.s32 %v197, 4294967272
      %v217 = vlaneseq
      %v218 = vshrl.u32 %v217, 7
      %v219 = vsub.s32 %v216, %v218
      %v220 = vrot.slane %v159, %v219
      %vm221 = vcmask 261312
      %v222 = vsel %vm221, %v220, %v215
      %v223 = vlaneseq
      %v224 = vshrl.u32 %v223, 7
      %v225 = vsub.s32 %v197, %v224
      %v226 = vrot.slane %v160, %v225
      %v227 = vlaneseq
      %v228 = vshrl.u32 %v227, 7
      %v229 = vsub.s32 %v202, %v228
      %v230 = vrot.slane %v161, %v229
      %v231 = vsel %vm207, %v230, %v226
      %v232 = vlaneseq
      %v233 = vshrl.u32 %v232, 7
      %v234 = vsub.s32 %v209, %v233
      %v235 = vrot.slane %v162, %v234
      %v236 = vsel %vm214, %v235, %v231
      %v237 = vlaneseq
      %v238 = vshrl.u32 %v237, 7
      %v239 = vsub.s32 %v216, %v238
      %v240 = vrot.slane %v163, %v239
      %v241 = vsel %vm221, %v240, %v236
      %vm242 = vcmask 1041409
      %v243 = vsel %vm242, %v241, %v222
      %v253 = vlaneseq
      %v254 = vshrl.u32 %v253, 7
      %v255 = vsub.s32 %v197, %v254
      %v256 = vrot.slane %v173, %v255
      %v257 = vlaneseq
      %v258 = vshrl.u32 %v257, 7
      %v259 = vsub.s32 %v202, %v258
      %v260 = vrot.slane %v175, %v259
      %v261 = vsel %vm207, %v260, %v256
      %v262 = vlaneseq
      %v263 = vshrl.u32 %v262, 7
      %v264 = vsub.s32 %v209, %v263
      %v265 = vrot.slane %v177, %v264
      %v266 = vsel %vm214, %v265, %v261
      %v267 = vlaneseq
      %v268 = vshrl.u32 %v267, 7
      %v269 = vsub.s32 %v216, %v268
      %v270 = vrot.slane %v179, %v269
      %v271 = vsel %vm221, %v270, %v266
      %v272 = vlaneseq
      %v273 = vshrl.u32 %v272, 7
      %v274 = vsub.s32 %v197, %v273
      %v275 = vrot.slane %v181, %v274
      %v276 = vlaneseq
      %v277 = vshrl.u32 %v276, 7
      %v278 = vsub.s32 %v202, %v277
      %v279 = vrot.slane %v183, %v278
      %v280 = vsel %vm207, %v279, %v275
      %v281 = vlaneseq
      %v282 = vshrl.u32 %v281, 7
      %v283 = vsub.s32 %v209, %v282
      %v284 = vrot.slane %v185, %v283
      %v285 = vsel %vm214, %v284, %v280
      %v286 = vlaneseq
      %v287 = vshrl.u32 %v286, 7
      %v288 = vsub.s32 %v216, %v287
      %v289 = vrot.slane %v187, %v288
      %v290 = vsel %vm221, %v289, %v285
      %vm291 = vcmask 1043459
      %v292 = vsel %vm291, %v290, %v271
      %vm294 = vcmask 1041408
      %v295 = vsel %vm294, %v243, %v292
      %v296 = vld [vmem:[%s1] sm:$0xff]
      %v297 = vld [vmem:[%s1 + $0x8] sm:$0xff]
      %v298 = vld [vmem:[%s1 + $0x10] sm:$0xff]
      %v299 = vld [vmem:[%s1 + $0x18] sm:$0xff]
      %vm300 = vcmask 261120
      %v302 = vsel %vm300, %v295, 0
      %304 = vmatprep.subr.mxu0 0.0
      %305 = vmatpush1.msra.mxu0 0.0
      %306 = vmatprep.subr.mxu0 0.0
      %307 = vmatpush1.msra.mxu0 0.0
      %308 = vmatprep.subr.mxu0 0.0
      %309 = vmatpush1.msra.mxu0 0.0
      %310 = vmatprep.subr.mxu0 0.0
      %311 = vmatpush1.msra.mxu0 0.0
      %312 = vmatprep.subr.mxu0 0.0
      %313 = vmatpush1.msra.mxu0 0.0
      %314 = vmatprep.subr.mxu0 0.0
      %315 = vmatpush1.msra.mxu0 0.0
      %316 = vmatprep.subr.mxu0 0.0
      %317 = vmatpush1.msra.mxu0 0.0
      %318 = vmatprep.subr.mxu0 0.0
      %319 = vmatpush1.msra.mxu0 0.0
      %320 = vmatprep.subr.mxu0 0.0
      %321 = vmatpush1.msra.mxu0 0.0
      %322 = vmatprep.subr.mxu0 0.0
      %323 = vmatpush1.msra.mxu0 0.0
      %324 = vmatprep.subr.mxu0 0.0
      %325 = vmatpush1.msra.mxu0 0.0
      %326 = vmatprep.subr.mxu0 0.0
      %327 = vmatpush1.msra.mxu0 0.0
      %328 = vmatprep.subr.mxu0 0.0
      %329 = vmatpush1.msra.mxu0 %v299
      %330 = vmatprep.subr.mxu0 0.0
      %331 = vmatpush1.msra.mxu0 %v298
      %332 = vmatprep.subr.mxu0 0.0
      %333 = vmatpush1.msra.mxu0 %v297
      %334 = vmatprep.subr.mxu0 0.0
      %335 = vmatpush1.msra.mxu0 %v296
      %336 = vmatprep.subr.mxu0 0.0
      %337 = vmatpush2.msra.mxu0 0.0
      %338 = vmatprep.subr.mxu0 0.0
      %339 = vmatpush2.msra.mxu0 0.0
      %340 = vmatprep.subr.mxu0 0.0
      %341 = vmatpush2.msra.mxu0 0.0
      %342 = vmatprep.subr.mxu0 0.0
      %343 = vmatpush2.msra.mxu0 0.0
      %344 = vmatprep.subr.mxu0 0.0
      %345 = vmatpush2.msra.mxu0 0.0
      %346 = vmatprep.subr.mxu0 0.0
      %347 = vmatpush2.msra.mxu0 0.0
      %348 = vmatprep.subr.mxu0 0.0
      %349 = vmatpush2.msra.mxu0 0.0
      %350 = vmatprep.subr.mxu0 0.0
      %351 = vmatpush2.msra.mxu0 0.0
      %352 = vmatprep.subr.mxu0 0.0
      %353 = vmatpush2.msra.mxu0 0.0
      %354 = vmatprep.subr.mxu0 0.0
      %355 = vmatpush2.msra.mxu0 0.0
      %356 = vmatprep.subr.mxu0 0.0
      %357 = vmatpush2.msra.mxu0 0.0
      %358 = vmatprep.subr.mxu0 0.0
      %359 = vmatpush2.msra.mxu0 0.0
      %360 = vmatprep.subr.mxu0 0.0
      %361 = vmatpush2.msra.mxu0 0.0
      %362 = vmatprep.subr.mxu0 0.0
      %363 = vmatpush2.msra.mxu0 0.0
      %364 = vmatprep.subr.mxu0 0.0
      %365 = vmatpush2.msra.mxu0 0.0
      %366 = vmatprep.subr.mxu0 0.0
      %367 = vmatpush2.msra.mxu0 0.0
      %368 = vmatprep.mubr.f32.mxu0 0.0
      %369 = vmatmul.mubr.f32.gmra.mxu0 %v302
      %v370 = vpop.f32.mrf.mxu0
      %v371 = vadd.f32 0.0, %v370
      %v372 = vpop.f32.mrf.mxu0
      %373 = vdwg.mxu0
      %v374 = vmax.f32 %v371, 0.0
      %v375 = vld [vmem:[%s2] sm:$0x3]
      %vm376 = vcmask 15360
      %v378 = vsel %vm376, %v374, 0
      %v381 = vsel %vm294, %v375, 0
      %383 = vmatprep.subr.mxu0 0.0
      %384 = vmatpush1.msra.mxu0 0.0
      %385 = vmatprep.subr.mxu0 0.0
      %386 = vmatpush1.msra.mxu0 0.0
      %387 = vmatprep.subr.mxu0 0.0
      %388 = vmatpush1.msra.mxu0 0.0
      %389 = vmatprep.subr.mxu0 0.0
      %390 = vmatpush1.msra.mxu0 0.0
      %391 = vmatprep.subr.mxu0 0.0
      %392 = vmatpush1.msra.mxu0 0.0
      %393 = vmatprep.subr.mxu0 0.0
      %394 = vmatpush1.msra.mxu0 0.0
      %395 = vmatprep.subr.mxu0 0.0
      %396 = vmatpush1.msra.mxu0 0.0
      %397 = vmatprep.subr.mxu0 0.0
      %398 = vmatpush1.msra.mxu0 0.0
      %399 = vmatprep.subr.mxu0 0.0
      %400 = vmatpush1.msra.mxu0 0.0
      %401 = vmatprep.subr.mxu0 0.0
      %402 = vmatpush1.msra.mxu0 0.0
      %403 = vmatprep.subr.mxu0 0.0
      %404 = vmatpush1.msra.mxu0 0.0
      %405 = vmatprep.subr.mxu0 0.0
      %406 = vmatpush1.msra.mxu0 0.0
      %407 = vmatprep.subr.mxu0 0.0
      %408 = vmatpush1.msra.mxu0 0.0
      %409 = vmatprep.subr.mxu0 0.0
      %410 = vmatpush1.msra.mxu0 0.0
      %411 = vmatprep.subr.mxu0 0.0
      %412 = vmatpush1.msra.mxu0 0.0
      %413 = vmatprep.subr.mxu0 0.0
      %414 = vmatpush1.msra.mxu0 %v381
      %415 = vmatprep.subr.mxu0 0.0
      %416 = vmatpush2.msra.mxu0 0.0
      %417 = vmatprep.subr.mxu0 0.0
      %418 = vmatpush2.msra.mxu0 0.0
      %419 = vmatprep.subr.mxu0 0.0
      %420 = vmatpush2.msra.mxu0 0.0
      %421 = vmatprep.subr.mxu0 0.0
      %422 = vmatpush2.msra.mxu0 0.0
      %423 = vmatprep.subr.mxu0 0.0
      %424 = vmatpush2.msra.mxu0 0.0
      %425 = vmatprep.subr.mxu0 0.0
      %426 = vmatpush2.msra.mxu0 0.0
      %427 = vmatprep.subr.mxu0 0.0
      %428 = vmatpush2.msra.mxu0 0.0
      %429 = vmatprep.subr.mxu0 0.0
      %430 = vmatpush2.msra.mxu0 0.0
      %431 = vmatprep.subr.mxu0 0.0
      %432 = vmatpush2.msra.mxu0 0.0
      %433 = vmatprep.subr.mxu0 0.0
      %434 = vmatpush2.msra.mxu0 0.0
      %435 = vmatprep.subr.mxu0 0.0
      %436 = vmatpush2.msra.mxu0 0.0
      %437 = vmatprep.subr.mxu0 0.0
      %438 = vmatpush2.msra.mxu0 0.0
      %439 = vmatprep.subr.mxu0 0.0
      %440 = vmatpush2.msra.mxu0 0.0
      %441 = vmatprep.subr.mxu0 0.0
      %442 = vmatpush2.msra.mxu0 0.0
      %443 = vmatprep.subr.mxu0 0.0
      %444 = vmatpush2.msra.mxu0 0.0
      %445 = vmatprep.subr.mxu0 0.0
      %446 = vmatpush2.msra.mxu0 0.0
      %447 = vmatprep.mubr.f32.mxu0 0.0
      %448 = vmatmul.mubr.f32.gmra.mxu0 %v378
      %v449 = vpop.f32.mrf.mxu0
      %v450 = vadd.f32 0.0, %v449
      %v451 = vpop.f32.mrf.mxu0
      %452 = vdwg.mxu0
      %v454 = vrot.slane %v450, 2
      %v456 = vadd.f32 %v450, %v454
      %v457 = vxor.u32 %v456, 2147483648
      %v458 = vmul.f32 %v457, 1.442695
      %v459 = vpow.pop %v458
      %v460 = vadd.f32 %v459, 1.0
      %v461 = vrcp.pop %v460
      %v462 = vmul.f32 1.0, %v461
      %v465 = vunpack.c.l.s4 1966171168
      %v466 = vunpack.c.0.s8 %v465
      %v467 = vlaneseq
      %v468 = vshrl.u32 %v467, 7
      %v469 = vsub.s32 %v466, %v468
      %v470 = vrot.slane %v462, %v469
      %v471 = vcombine.high %v470, %v470
      %v473 = vunpack.c.l.s4 1966171168
      %v474 = vunpack.c.0.s8 %v473
      %v475 = vlaneseq
      %v476 = vshrl.u32 %v475, 7
      %v477 = vsub.s32 %v474, %v476
      %v478 = vrot.slane %v470, %v477
      %v480 = vunpack.c.l.s4 1966171168
      %v481 = vunpack.c.0.s8 %v480
      %v482 = vlaneseq
      %v483 = vshrl.u32 %v482, 7
      %v484 = vsub.s32 %v481, %v483
      %v485 = vrot.slane %v471, %v484
      %vm488 = vcmask 253952
      %489 = vst.msk [vmem:[#allocation7] sm:$0x1] %vm488, %v478
      %490 = vst.msk [vmem:[#allocation7 + $0x1] sm:$0x1] %vm488, %v485
    $region25: #{tpu_custom_call.1} parent=1 // pred_fallthru
      _
    // Predicated region
    $region26: #{tpu_custom_call.1} parent=1 // pred_check
      _
    $region27: #{tpu_custom_call.1} parent=1 // pred_check_branch
      %492 = sbr.rel (0) target = $region29
    $region28: #{tpu_custom_call.1} parent=1 // pred_region
      %s494 = ssub.s32 32, 32
      %495 = vsyncadd [#allocation6], %s494
      %s496 = sshll.u32 [#allocation7], 4
      %s497 = int_to_ptr.vmem [resolvable:$true] %s496
      %502 = dma.vmem_to_hbm [thread:$0]  %s497, 32, %s3, [#allocation6], 16, 16, 1
    $region29: #{tpu_custom_call.1} parent=1 // pred_fallthru
      _
    // Predicated region
    $region30: #{tpu_custom_call.1} parent=1 // pred_check
      _
    $region31: #{tpu_custom_call.1} parent=1 // pred_check_branch
      %504 = sbr.rel (0) target = $region33
    $region32: #{tpu_custom_call.1} parent=1 // pred_region
      %505 = dma.done [#allocation6], 32
    $region33: #{tpu_custom_call.1} parent=1 // pred_fallthru
      _
    %506 = vsyncpa [#allocation5], 1
    %507 = vsyncpa [#allocation6], 1

</llo_original>
